<compile_context>
chip_gen: v5e
topology: v5e:2x2
jax: 0.10.0
libtpu: 0.0.40
codegen_flags: <defaults>
</compile_context>

<pallas_src>
import jax
import jax.numpy as jnp
from jax import lax
from jax.experimental import pallas as pl
from jax.experimental.pallas import tpu as pltpu


# ----------------------------- flags / shapes --------------------------------
B = 8                      # batch
LINEAR = [4, 32, 32]       # flags.linear  (geometry dim 4, two hidden layers)
D_IN = LINEAR[0]
HID = LINEAR[-1]
N_OSC = 4                  # flags.num_lorentz_osc
N_SPEC = 128               # flags.num_spec_points
LANE = 128                 # lane-dense padded width for all params/activations
FREQ_LO, FREQ_HI = 0.5, 5.0
FREQ_STEP = (FREQ_HI - FREQ_LO) / N_SPEC

# Packed-parameter row layout (all offsets 8-sublane aligned).
ROW_W1 = 0                       # (D_IN, LANE)
ROW_B1 = 8                       # (1, LANE)
ROW_W2 = 16                      # (LANE, LANE)
ROW_B2 = ROW_W2 + LANE           # (1, LANE)          -> 144
ROW_WH = ROW_B2 + 8              # (LANE, LANE)       -> 152
ROW_BH = ROW_WH + LANE           # (1, LANE)          -> 280
N_ROWS = ROW_BH + 8              # 288 rows x 128 lanes x 4 B  ~= 147 KB


# ------------------------------- kernel --------------------------------------
def forward_kernel(g_ref, p_ref, t_ref, heads_ref):
    x = g_ref[...]                                               # (B, D_IN)

    # ---- MLP trunk (PyTorch loop always takes relu(fc(out)); BatchNorms are
    #      constructed but never applied in forward()).  All intermediates are
    #      lane-dense (B, 128); padded lanes stay exactly zero. ----
    w1 = p_ref[ROW_W1:ROW_W1 + D_IN, :]
    b1 = p_ref[ROW_B1:ROW_B1 + 1, :]
    h = jnp.maximum(jnp.dot(x, w1, preferred_element_type=jnp.float32) + b1, 0.0)

    w2 = p_ref[ROW_W2:ROW_W2 + LANE, :]
    b2 = p_ref[ROW_B2:ROW_B2 + 1, :]
    h = jnp.maximum(jnp.dot(h, w2, preferred_element_type=jnp.float32) + b2, 0.0)
    # (extra F.relu(out) before the heads is a no-op after the relu trunk)

    # ---- fused heads [w0 | wp | g]: one matmul + one leaky_relu (slope 0.01) ----
    wh = p_ref[ROW_WH:ROW_WH + LANE, :]
    bh = p_ref[ROW_BH:ROW_BH + 1, :]
    hd = jnp.dot(h, wh, preferred_element_type=jnp.float32) + bh   # (B, 128)
    hd = jnp.where(hd >= 0.0, hd, 0.01 * hd)
    heads_ref[...] = hd                       # single unmasked lane-dense store

    # ---- frequency grid generated in-kernel: (1, N_SPEC) ----
    we = (lax.broadcasted_iota(jnp.int32, (1, N_SPEC), 1).astype(jnp.float32)
          * FREQ_STEP + FREQ_LO)
    we2 = we * we

    # ---- Lorentz sum, (N_OSC, B, N_SPEC)-equivalent layout via static unroll:
    #      every temp is exactly one full (B, N_SPEC) = (8,128) vreg and the
    #      oscillator reduction is N_OSC-1 plain vadds. ----
    t = jnp.zeros((B, N_SPEC), jnp.float32)
    for k in range(N_OSC):
        w0k = hd[:, k:k + 1]                                    # (B, 1)
        wpk = hd[:, N_OSC + k:N_OSC + k + 1]                    # (B, 1)
        gk = hd[:, 2 * N_OSC + k:2 * N_OSC + k + 1] * 0.1       # (B, 1)
        num = (wpk * wpk) * (gk * we)                           # (B, N_SPEC)
        diff = (w0k * w0k) - we2
        denom = diff * diff + we2 * (gk * gk)
        t = t + num / denom                                     # exact f32 divide
    t_ref[...] = t


# ------------------------ param packing (model-load time) ---------------------
def pack_params(params):
    """Pack all weights/biases into one lane-dense (N_ROWS, 128) f32 buffer.

    Done ONCE at model load -- not in the per-call path.
    """
    (W1, b1, W2, b2, Ww0, bw0, Wwp, bwp, Wg, bg) = params
    Whead = jnp.concatenate([Ww0, Wwp, Wg], axis=1)          # (HID, 3*N_OSC)
    bhead = jnp.concatenate([bw0, bwp, bg], axis=1)          # (1, 3*N_OSC)

    buf = jnp.zeros((N_ROWS, LANE), jnp.float32)

    def put(b, row, arr):
        r, c = arr.shape
        return b.at[row:row + r, 0:c].set(arr.astype(jnp.float32))

    buf = put(buf, ROW_W1, W1)
    buf = put(buf, ROW_B1, b1)
    buf = put(buf, ROW_W2, W2)
    buf = put(buf, ROW_B2, b2)
    buf = put(buf, ROW_WH, Whead)
    buf = put(buf, ROW_BH, bhead)
    return buf


# ------------------------------- wrapper --------------------------------------
def make_forward():
    vmem = pl.BlockSpec(memory_space=pltpu.MemorySpace.VMEM)
    call = pl.pallas_call(
        forward_kernel,
        out_shape=(
            jax.ShapeDtypeStruct((B, N_SPEC), jnp.float32),   # T
            jax.ShapeDtypeStruct((B, LANE), jnp.float32),     # packed heads (lane-dense)
        ),
        in_specs=[vmem, vmem],
        out_specs=(vmem, vmem),
    )

    @jax.jit
    def forward(G, packed_params):
        T, heads = call(G, packed_params)
        w0 = heads[:, 0:N_OSC]
        wp = heads[:, N_OSC:2 * N_OSC]
        g = heads[:, 2 * N_OSC:3 * N_OSC]
        return T, w0, wp, g

    return forward


# --------------------------- reference (plain JAX) -----------------------------
def forward_ref(G, params):
    (W1, b1, W2, b2, Ww0, bw0, Wwp, bwp, Wg, bg) = params
    h = jax.nn.relu(G @ W1 + b1)
    h = jax.nn.relu(h @ W2 + b2)
    hr = jax.nn.relu(h)
    w0 = jax.nn.leaky_relu(hr @ Ww0 + bw0)
    wp = jax.nn.leaky_relu(hr @ Wwp + bwp)
    g = jax.nn.leaky_relu(hr @ Wg + bg)
    w_freq = FREQ_LO + FREQ_STEP * jnp.arange(N_SPEC, dtype=jnp.float32)
    we = w_freq[None, None, :]
    w0e = w0[:, :, None]
    wpe = wp[:, :, None]
    ge = g[:, :, None] * 0.1
    num = wpe ** 2 * (we * ge)
    denom = (w0e ** 2 - we ** 2) ** 2 + we ** 2 * ge ** 2
    T = jnp.sum(num / denom, axis=1)
    return T, w0, wp, g


# --------------------------------- main ----------------------------------------
if __name__ == "__main__":
    # Use full-precision matmuls on both paths so kernel/reference agree tightly.
    jax.config.update("jax_default_matmul_precision", "highest")

    key = jax.random.PRNGKey(0)
    ks = jax.random.split(key, 12)

    def wmat(k, shape, scale=0.3):
        return (scale * jax.random.normal(k, shape)).astype(jnp.float32)

    W1 = wmat(ks[0], (D_IN, LINEAR[1]))
    b1 = wmat(ks[1], (1, LINEAR[1]), 0.1)
    W2 = wmat(ks[2], (LINEAR[1], LINEAR[2]))
    b2 = wmat(ks[3], (1, LINEAR[2]), 0.1)
    Ww0 = wmat(ks[4], (HID, N_OSC))
    bw0 = jnp.full((1, N_OSC), 1.5, jnp.float32)    # keep w0 inside the freq band
    Wwp = wmat(ks[5], (HID, N_OSC))
    bwp = jnp.full((1, N_OSC), 1.0, jnp.float32)
    Wg = wmat(ks[6], (HID, N_OSC))
    bg = jnp.full((1, N_OSC), 0.5, jnp.float32)
    params = (W1, b1, W2, b2, Ww0, bw0, Wwp, bwp, Wg, bg)

    G = jax.random.normal(ks[7], (B, D_IN), dtype=jnp.float32)

    packed = pack_params(params)          # model-load time, not per call
    forward = make_forward()

    T, w0_o, wp_o, g_o = forward(G, packed)
    jax.block_until_ready((T, w0_o, wp_o, g_o))

    T_r, w0_r, wp_r, g_r = forward_ref(G, params)

    assert T.shape == (B, N_SPEC) and w0_o.shape == (B, N_OSC)
    assert jnp.allclose(T, T_r, rtol=1e-3, atol=1e-4)
    assert jnp.allclose(w0_o, w0_r, rtol=1e-3, atol=1e-5)
    assert jnp.allclose(wp_o, wp_r, rtol=1e-3, atol=1e-5)
    assert jnp.allclose(g_o, g_r, rtol=1e-3, atol=1e-5)

    # TODO(synk): use_conv=True branch (ConvTranspose1d stack) not implemented;
    # the exercised path is use_lorentz=True, matching the module's main return.
    print("KERNEL_OK")
</pallas_src>

<mosaic_0001>
module attributes {stable_mosaic.version = 11 : i64} {
  func.func @forward_kernel(%arg0: memref<8x4xf32, #tpu.memory_space<vmem>>, %arg1: memref<288x128xf32, #tpu.memory_space<vmem>>, %arg2: memref<8x128xf32, #tpu.memory_space<vmem>>, %arg3: memref<8x128xf32, #tpu.memory_space<vmem>>) attributes {dimension_semantics = [], scalar_prefetch = 0 : i64, scratch_operands = 0 : i64, tpu.core_type = #tpu.core_type<tc>} {
    %c0 = arith.constant 0 : index
    %c0_0 = arith.constant 0 : index
    %0 = vector.load %arg0[%c0, %c0_0] : memref<8x4xf32, #tpu.memory_space<vmem>>, vector<8x4xf32>
    %c0_1 = arith.constant 0 : index
    %c0_2 = arith.constant 0 : index
    %1 = vector.load %arg1[%c0_1, %c0_2] : memref<288x128xf32, #tpu.memory_space<vmem>>, vector<4x128xf32>
    %c8 = arith.constant 8 : index
    %c0_3 = arith.constant 0 : index
    %2 = vector.load %arg1[%c8, %c0_3] : memref<288x128xf32, #tpu.memory_space<vmem>>, vector<1x128xf32>
    %cst = arith.constant dense<0.000000e+00> : vector<8x128xf32>
    %3 = tpu.matmul %0, %1, %cst {dimension_numbers = #tpu.dot_dimension_numbers<[1], [0], [0], [1], [0, 0, 1, 1], [], []>, precision = #tpu.contract_precision<fp32>} : vector<8x4xf32>, vector<4x128xf32>, vector<8x128xf32> -> vector<8x128xf32>
    %4 = vector.broadcast %2 : vector<1x128xf32> to vector<8x128xf32>
    %5 = arith.addf %3, %4 : vector<8x128xf32>
    %cst_4 = arith.constant 0.000000e+00 : f32
    %6 = vector.broadcast %cst_4 : f32 to vector<8x128xf32>
    %7 = arith.maximumf %5, %6 : vector<8x128xf32>
    %c16 = arith.constant 16 : index
    %c0_5 = arith.constant 0 : index
    %8 = vector.load %arg1[%c16, %c0_5] : memref<288x128xf32, #tpu.memory_space<vmem>>, vector<128x128xf32>
    %c144 = arith.constant 144 : index
    %c0_6 = arith.constant 0 : index
    %9 = vector.load %arg1[%c144, %c0_6] : memref<288x128xf32, #tpu.memory_space<vmem>>, vector<1x128xf32>
    %cst_7 = arith.constant dense<0.000000e+00> : vector<8x128xf32>
    %10 = tpu.matmul %7, %8, %cst_7 {dimension_numbers = #tpu.dot_dimension_numbers<[1], [0], [0], [1], [0, 0, 1, 1], [], []>, precision = #tpu.contract_precision<fp32>} : vector<8x128xf32>, vector<128x128xf32>, vector<8x128xf32> -> vector<8x128xf32>
    %11 = vector.broadcast %9 : vector<1x128xf32> to vector<8x128xf32>
    %12 = arith.addf %10, %11 : vector<8x128xf32>
    %cst_8 = arith.constant 0.000000e+00 : f32
    %13 = vector.broadcast %cst_8 : f32 to vector<8x128xf32>
    %14 = arith.maximumf %12, %13 : vector<8x128xf32>
    %c152 = arith.constant 152 : index
    %c0_9 = arith.constant 0 : index
    %15 = vector.load %arg1[%c152, %c0_9] : memref<288x128xf32, #tpu.memory_space<vmem>>, vector<128x128xf32>
    %c280 = arith.constant 280 : index
    %c0_10 = arith.constant 0 : index
    %16 = vector.load %arg1[%c280, %c0_10] : memref<288x128xf32, #tpu.memory_space<vmem>>, vector<1x128xf32>
    %cst_11 = arith.constant dense<0.000000e+00> : vector<8x128xf32>
    %17 = tpu.matmul %14, %15, %cst_11 {dimension_numbers = #tpu.dot_dimension_numbers<[1], [0], [0], [1], [0, 0, 1, 1], [], []>, precision = #tpu.contract_precision<fp32>} : vector<8x128xf32>, vector<128x128xf32>, vector<8x128xf32> -> vector<8x128xf32>
    %18 = vector.broadcast %16 : vector<1x128xf32> to vector<8x128xf32>
    %19 = arith.addf %17, %18 : vector<8x128xf32>
    %cst_12 = arith.constant 0.000000e+00 : f32
    %20 = vector.broadcast %cst_12 : f32 to vector<8x128xf32>
    %21 = arith.cmpf oge, %19, %20 : vector<8x128xf32>
    %cst_13 = arith.constant 0.00999999977 : f32
    %22 = vector.broadcast %cst_13 : f32 to vector<8x128xf32>
    %23 = arith.mulf %22, %19 : vector<8x128xf32>
    %24 = arith.select %21, %19, %23 : vector<8x128xi1>, vector<8x128xf32>
    %c0_14 = arith.constant 0 : index
    %c0_15 = arith.constant 0 : index
    %25 = vector.load %arg3[%c0_14, %c0_15] : memref<8x128xf32, #tpu.memory_space<vmem>>, vector<8x128xf32>
    tpu.vector_store %arg3[%c0_14, %c0_15], %24 {strides = array<i32>} : memref<8x128xf32, #tpu.memory_space<vmem>>, vector<8x128xf32>,
    %26 = tpu.iota {dimensions = array<i32: 1>} : vector<1x128xi32>
    %27 = arith.sitofp %26 : vector<1x128xi32> to vector<1x128xf32>
    %cst_16 = arith.constant 0.03515625 : f32
    %28 = vector.broadcast %cst_16 : f32 to vector<1x128xf32>
    %29 = arith.mulf %27, %28 : vector<1x128xf32>
    %cst_17 = arith.constant 5.000000e-01 : f32
    %30 = vector.broadcast %cst_17 : f32 to vector<1x128xf32>
    %31 = arith.addf %29, %30 : vector<1x128xf32>
    %32 = arith.mulf %31, %31 : vector<1x128xf32>
    %cst_18 = arith.constant 0.000000e+00 : f32
    %33 = vector.broadcast %cst_18 : f32 to vector<8x128xf32>
    %34 = vector.extract_strided_slice %24 {offsets = [0, 0], sizes = [8, 1], strides = [1, 1]} : vector<8x128xf32> to vector<8x1xf32>
    %35 = vector.extract_strided_slice %24 {offsets = [0, 4], sizes = [8, 1], strides = [1, 1]} : vector<8x128xf32> to vector<8x1xf32>
    %36 = vector.extract_strided_slice %24 {offsets = [0, 8], sizes = [8, 1], strides = [1, 1]} : vector<8x128xf32> to vector<8x1xf32>
    %cst_19 = arith.constant 1.000000e-01 : f32
    %37 = vector.broadcast %cst_19 : f32 to vector<8x1xf32>
    %38 = arith.mulf %36, %37 : vector<8x1xf32>
    %39 = arith.mulf %35, %35 : vector<8x1xf32>
    %40 = vector.broadcast %38 : vector<8x1xf32> to vector<8x128xf32>
    %41 = vector.broadcast %31 : vector<1x128xf32> to vector<8x128xf32>
    %42 = arith.mulf %40, %41 : vector<8x128xf32>
    %43 = vector.broadcast %39 : vector<8x1xf32> to vector<8x128xf32>
    %44 = arith.mulf %43, %42 : vector<8x128xf32>
    %45 = arith.mulf %34, %34 : vector<8x1xf32>
    %46 = vector.broadcast %45 : vector<8x1xf32> to vector<8x128xf32>
    %47 = vector.broadcast %32 : vector<1x128xf32> to vector<8x128xf32>
    %48 = arith.subf %46, %47 : vector<8x128xf32>
    %49 = arith.mulf %48, %48 : vector<8x128xf32>
    %50 = arith.mulf %38, %38 : vector<8x1xf32>
    %51 = vector.broadcast %32 : vector<1x128xf32> to vector<8x128xf32>
    %52 = vector.broadcast %50 : vector<8x1xf32> to vector<8x128xf32>
    %53 = arith.mulf %51, %52 : vector<8x128xf32>
    %54 = arith.addf %49, %53 : vector<8x128xf32>
    %55 = arith.divf %44, %54 : vector<8x128xf32>
    %56 = arith.addf %33, %55 : vector<8x128xf32>
    %57 = vector.extract_strided_slice %24 {offsets = [0, 1], sizes = [8, 1], strides = [1, 1]} : vector<8x128xf32> to vector<8x1xf32>
    %58 = vector.extract_strided_slice %24 {offsets = [0, 5], sizes = [8, 1], strides = [1, 1]} : vector<8x128xf32> to vector<8x1xf32>
    %59 = vector.extract_strided_slice %24 {offsets = [0, 9], sizes = [8, 1], strides = [1, 1]} : vector<8x128xf32> to vector<8x1xf32>
    %cst_20 = arith.constant 1.000000e-01 : f32
    %60 = vector.broadcast %cst_20 : f32 to vector<8x1xf32>
    %61 = arith.mulf %59, %60 : vector<8x1xf32>
    %62 = arith.mulf %58, %58 : vector<8x1xf32>
    %63 = vector.broadcast %61 : vector<8x1xf32> to vector<8x128xf32>
    %64 = vector.broadcast %31 : vector<1x128xf32> to vector<8x128xf32>
    %65 = arith.mulf %63, %64 : vector<8x128xf32>
    %66 = vector.broadcast %62 : vector<8x1xf32> to vector<8x128xf32>
    %67 = arith.mulf %66, %65 : vector<8x128xf32>
    %68 = arith.mulf %57, %57 : vector<8x1xf32>
    %69 = vector.broadcast %68 : vector<8x1xf32> to vector<8x128xf32>
    %70 = vector.broadcast %32 : vector<1x128xf32> to vector<8x128xf32>
    %71 = arith.subf %69, %70 : vector<8x128xf32>
    %72 = arith.mulf %71, %71 : vector<8x128xf32>
    %73 = arith.mulf %61, %61 : vector<8x1xf32>
    %74 = vector.broadcast %32 : vector<1x128xf32> to vector<8x128xf32>
    %75 = vector.broadcast %73 : vector<8x1xf32> to vector<8x128xf32>
    %76 = arith.mulf %74, %75 : vector<8x128xf32>
    %77 = arith.addf %72, %76 : vector<8x128xf32>
    %78 = arith.divf %67, %77 : vector<8x128xf32>
    %79 = arith.addf %56, %78 : vector<8x128xf32>
    %80 = vector.extract_strided_slice %24 {offsets = [0, 2], sizes = [8, 1], strides = [1, 1]} : vector<8x128xf32> to vector<8x1xf32>
    %81 = vector.extract_strided_slice %24 {offsets = [0, 6], sizes = [8, 1], strides = [1, 1]} : vector<8x128xf32> to vector<8x1xf32>
    %82 = vector.extract_strided_slice %24 {offsets = [0, 10], sizes = [8, 1], strides = [1, 1]} : vector<8x128xf32> to vector<8x1xf32>
    %cst_21 = arith.constant 1.000000e-01 : f32
    %83 = vector.broadcast %cst_21 : f32 to vector<8x1xf32>
    %84 = arith.mulf %82, %83 : vector<8x1xf32>
    %85 = arith.mulf %81, %81 : vector<8x1xf32>
    %86 = vector.broadcast %84 : vector<8x1xf32> to vector<8x128xf32>
    %87 = vector.broadcast %31 : vector<1x128xf32> to vector<8x128xf32>
    %88 = arith.mulf %86, %87 : vector<8x128xf32>
    %89 = vector.broadcast %85 : vector<8x1xf32> to vector<8x128xf32>
    %90 = arith.mulf %89, %88 : vector<8x128xf32>
    %91 = arith.mulf %80, %80 : vector<8x1xf32>
    %92 = vector.broadcast %91 : vector<8x1xf32> to vector<8x128xf32>
    %93 = vector.broadcast %32 : vector<1x128xf32> to vector<8x128xf32>
    %94 = arith.subf %92, %93 : vector<8x128xf32>
    %95 = arith.mulf %94, %94 : vector<8x128xf32>
    %96 = arith.mulf %84, %84 : vector<8x1xf32>
    %97 = vector.broadcast %32 : vector<1x128xf32> to vector<8x128xf32>
    %98 = vector.broadcast %96 : vector<8x1xf32> to vector<8x128xf32>
    %99 = arith.mulf %97, %98 : vector<8x128xf32>
    %100 = arith.addf %95, %99 : vector<8x128xf32>
    %101 = arith.divf %90, %100 : vector<8x128xf32>
    %102 = arith.addf %79, %101 : vector<8x128xf32>
    %103 = vector.extract_strided_slice %24 {offsets = [0, 3], sizes = [8, 1], strides = [1, 1]} : vector<8x128xf32> to vector<8x1xf32>
    %104 = vector.extract_strided_slice %24 {offsets = [0, 7], sizes = [8, 1], strides = [1, 1]} : vector<8x128xf32> to vector<8x1xf32>
    %105 = vector.extract_strided_slice %24 {offsets = [0, 11], sizes = [8, 1], strides = [1, 1]} : vector<8x128xf32> to vector<8x1xf32>
    %cst_22 = arith.constant 1.000000e-01 : f32
    %106 = vector.broadcast %cst_22 : f32 to vector<8x1xf32>
    %107 = arith.mulf %105, %106 : vector<8x1xf32>
    %108 = arith.mulf %104, %104 : vector<8x1xf32>
    %109 = vector.broadcast %107 : vector<8x1xf32> to vector<8x128xf32>
    %110 = vector.broadcast %31 : vector<1x128xf32> to vector<8x128xf32>
    %111 = arith.mulf %109, %110 : vector<8x128xf32>
    %112 = vector.broadcast %108 : vector<8x1xf32> to vector<8x128xf32>
    %113 = arith.mulf %112, %111 : vector<8x128xf32>
    %114 = arith.mulf %103, %103 : vector<8x1xf32>
    %115 = vector.broadcast %114 : vector<8x1xf32> to vector<8x128xf32>
    %116 = vector.broadcast %32 : vector<1x128xf32> to vector<8x128xf32>
    %117 = arith.subf %115, %116 : vector<8x128xf32>
    %118 = arith.mulf %117, %117 : vector<8x128xf32>
    %119 = arith.mulf %107, %107 : vector<8x1xf32>
    %120 = vector.broadcast %32 : vector<1x128xf32> to vector<8x128xf32>
    %121 = vector.broadcast %119 : vector<8x1xf32> to vector<8x128xf32>
    %122 = arith.mulf %120, %121 : vector<8x128xf32>
    %123 = arith.addf %118, %122 : vector<8x128xf32>
    %124 = arith.divf %113, %123 : vector<8x128xf32>
    %125 = arith.addf %102, %124 : vector<8x128xf32>
    %c0_23 = arith.constant 0 : index
    %c0_24 = arith.constant 0 : index
    %126 = vector.load %arg2[%c0_23, %c0_24] : memref<8x128xf32, #tpu.memory_space<vmem>>, vector<8x128xf32>
    tpu.vector_store %arg2[%c0_23, %c0_24], %125 {strides = array<i32>} : memref<8x128xf32, #tpu.memory_space<vmem>>, vector<8x128xf32>,
    return
  }
}

</mosaic_0001>

<llo_original>
// kernel: forward.1
$region0: #{forward.1}
  #allocation0 [shape = 'u32[]', space=smem, size = 0x4, offset = 0x4, fixed_abs, tag = 'smem constant byte address 0x4 - core index']
  #allocation1 [shape = 'u32[72,128]{1,0:T(1,128)}', space=vmem, size = 0x9000, scoped, tag = 'internal scratch']
  %s0 = inlined_call_operand.vmem [shape: f32[8,4], index: 0, kind: input, shape index: {}]
  %s1 = inlined_call_operand.hbm [shape: f32[288,128], index: 1, kind: input, shape index: {}]
  %s2 = inlined_call_operand.hbm [shape: f32[8,128], index: 2, kind: output, shape index: {0}]
  %s3 = inlined_call_operand.vmem [shape: f32[8,128], index: 3, kind: output, shape index: {1}]
  %4 = xla_tuple %s2, %s3
  %s5 = sld [smem:[#allocation0]]
  $region30: #{forward.1} parent=0
    _
  %s7 = ssub.s32 1, %s5
  %s8 = scalar_select 0, %s7, %s5
  $region1: #{forward.1} parent=0
    #allocation2 [shape = 'u8[147456]{0}', space=vmem, size = 0x24000, scoped, tag = 'input window, operand 1, single buffered']
    #allocation3 [shape = 's32[1]{0}', space=sflag, size = 0x4, scoped, tag = 'scoped memory for forward.1']
    #allocation4 [shape = 's32[1]{0}', space=sflag, size = 0x4, scoped, tag = 'scoped memory for forward.1']
    #allocation5 [shape = 'u8[4096]{0}', space=vmem, size = 0x1000, scoped, tag = 'output window, operand 0, single buffered']
    %9 = vsyncpa [#allocation3], 0
    %10 = vsyncpa [#allocation4], 0
    // Predicated region
    $region2: #{forward.1} parent=1 // pred_check
      _
    $region3: #{forward.1} parent=1 // pred_check_branch
      %12 = sbr.rel (0) target = $region5
    $region4: #{forward.1} parent=1 // pred_region
      _
    $region5: #{forward.1} parent=1 // pred_fallthru
      _
    // Predicated region
    $region6: #{forward.1} parent=1 // pred_check
      _
    $region7: #{forward.1} parent=1 // pred_check_branch
      %14 = sbr.rel (0) target = $region9
    $region8: #{forward.1} parent=1 // pred_region
      %16 = vsyncadd [#allocation3], 0
      %s17 = sshll.u32 %s1, 4
      %s18 = int_to_ptr.hbm [resolvable:$true] %s17
      %s19 = sshll.u32 [#allocation2], 4
      %s20 = int_to_ptr.vmem [resolvable:$true] %s19
      %25 = dma.hbm_to_vmem [thread:$0]  %s18, 4608, %s20, [#allocation3], 128, 128, 8
    $region9: #{forward.1} parent=1 // pred_fallthru
      _
    // Predicated region
    $region10: #{forward.1} parent=1 // pred_check
      _
    $region11: #{forward.1} parent=1 // pred_check_branch
      %27 = sbr.rel (0) target = $region13
    $region12: #{forward.1} parent=1 // pred_region
      %29 = dma.done [#allocation3], 4608
    $region13: #{forward.1} parent=1 // pred_fallthru
      _
    %v30 = vld [vmem:[%s0] sm:$0xff]
    %v31 = vld [vmem:[#allocation2] sm:$0xf]
    %v32 = vld [vmem:[#allocation2 + $0x8] sm:$0x1]
    %v33 = vperm.slane %v32, 0
    %vm34 = vcmask 31744
    %v36 = vsel %vm34, %v30, 0
    %vm38 = vcmask 1043456
    %v40 = vsel %vm38, %v31, 0
    %42 = vmatpush.msra.mxu0 0.0
    %43 = vmatpush.msra.mxu0 0.0
    %44 = vmatpush.msra.mxu0 0.0
    %45 = vmatpush.msra.mxu0 0.0
    %46 = vmatpush.msra.mxu0 0.0
    %47 = vmatpush.msra.mxu0 0.0
    %48 = vmatpush.msra.mxu0 0.0
    %49 = vmatpush.msra.mxu0 0.0
    %50 = vmatpush.msra.mxu0 0.0
    %51 = vmatpush.msra.mxu0 0.0
    %52 = vmatpush.msra.mxu0 0.0
    %53 = vmatpush.msra.mxu0 0.0
    %54 = vmatpush.msra.mxu0 0.0
    %55 = vmatpush.msra.mxu0 0.0
    %56 = vmatpush.msra.mxu0 0.0
    %v57 = vand.u32 %v40, 4294901760
    %58 = vmatpush.msra.mxu0 %v57
    %v59 = vand.u32 %v36, 4294901760
    %v60 = vsub.f32 %v36, %v59
    %v61 = vand.u32 %v60, 4294901760
    %v62 = vsub.f32 %v60, %v61
    %v63 = vand.u32 %v62, 4294901760
    %64 = vmatmul.f32.gmra.mxu0 %v63
    %v65 = vpop.f32.mrf.mxu0
    %v66 = vadd.f32 %v33, %v65
    %67 = vdwg.mxu0
    %68 = vmatpush.msra.mxu0 0.0
    %69 = vmatpush.msra.mxu0 0.0
    %70 = vmatpush.msra.mxu0 0.0
    %71 = vmatpush.msra.mxu0 0.0
    %72 = vmatpush.msra.mxu0 0.0
    %73 = vmatpush.msra.mxu0 0.0
    %74 = vmatpush.msra.mxu0 0.0
    %75 = vmatpush.msra.mxu0 0.0
    %76 = vmatpush.msra.mxu0 0.0
    %77 = vmatpush.msra.mxu0 0.0
    %78 = vmatpush.msra.mxu0 0.0
    %79 = vmatpush.msra.mxu0 0.0
    %80 = vmatpush.msra.mxu0 0.0
    %81 = vmatpush.msra.mxu0 0.0
    %82 = vmatpush.msra.mxu0 0.0
    %v83 = vand.u32 %v40, 4294901760
    %v84 = vsub.f32 %v40, %v83
    %v85 = vand.u32 %v84, 4294901760
    %v86 = vsub.f32 %v84, %v85
    %v87 = vand.u32 %v86, 4294901760
    %88 = vmatpush.msra.mxu0 %v87
    %v89 = vand.u32 %v36, 4294901760
    %90 = vmatmul.f32.gmra.mxu0 %v89
    %v91 = vpop.f32.mrf.mxu0
    %v92 = vadd.f32 %v66, %v91
    %93 = vdwg.mxu0
    %94 = vmatpush.msra.mxu0 0.0
    %95 = vmatpush.msra.mxu0 0.0
    %96 = vmatpush.msra.mxu0 0.0
    %97 = vmatpush.msra.mxu0 0.0
    %98 = vmatpush.msra.mxu0 0.0
    %99 = vmatpush.msra.mxu0 0.0
    %100 = vmatpush.msra.mxu0 0.0
    %101 = vmatpush.msra.mxu0 0.0
    %102 = vmatpush.msra.mxu0 0.0
    %103 = vmatpush.msra.mxu0 0.0
    %104 = vmatpush.msra.mxu0 0.0
    %105 = vmatpush.msra.mxu0 0.0
    %106 = vmatpush.msra.mxu0 0.0
    %107 = vmatpush.msra.mxu0 0.0
    %108 = vmatpush.msra.mxu0 0.0
    %v109 = vand.u32 %v40, 4294901760
    %v110 = vsub.f32 %v40, %v109
    %111 = vmatpush.msra.mxu0 %v110
    %v112 = vand.u32 %v36, 4294901760
    %v113 = vsub.f32 %v36, %v112
    %114 = vmatmul.f32.gmra.mxu0 %v113
    %v115 = vpop.f32.mrf.mxu0
    %v116 = vadd.f32 %v92, %v115
    %117 = vdwg.mxu0
    %118 = vmatpush.msra.mxu0 0.0
    %119 = vmatpush.msra.mxu0 0.0
    %120 = vmatpush.msra.mxu0 0.0
    %121 = vmatpush.msra.mxu0 0.0
    %122 = vmatpush.msra.mxu0 0.0
    %123 = vmatpush.msra.mxu0 0.0
    %124 = vmatpush.msra.mxu0 0.0
    %125 = vmatpush.msra.mxu0 0.0
    %126 = vmatpush.msra.mxu0 0.0
    %127 = vmatpush.msra.mxu0 0.0
    %128 = vmatpush.msra.mxu0 0.0
    %129 = vmatpush.msra.mxu0 0.0
    %130 = vmatpush.msra.mxu0 0.0
    %131 = vmatpush.msra.mxu0 0.0
    %132 = vmatpush.msra.mxu0 0.0
    %v133 = vand.u32 %v40, 4294901760
    %134 = vmatpush.msra.mxu0 %v133
    %v135 = vand.u32 %v36, 4294901760
    %v136 = vsub.f32 %v36, %v135
    %v137 = vand.u32 %v136, 4294901760
    %138 = vmatmul.f32.gmra.mxu0 %v137
    %v139 = vpop.f32.mrf.mxu0
    %v140 = vadd.f32 %v116, %v139
    %141 = vdwg.mxu0
    %142 = vmatpush.msra.mxu0 0.0
    %143 = vmatpush.msra.mxu0 0.0
    %144 = vmatpush.msra.mxu0 0.0
    %145 = vmatpush.msra.mxu0 0.0
    %146 = vmatpush.msra.mxu0 0.0
    %147 = vmatpush.msra.mxu0 0.0
    %148 = vmatpush.msra.mxu0 0.0
    %149 = vmatpush.msra.mxu0 0.0
    %150 = vmatpush.msra.mxu0 0.0
    %151 = vmatpush.msra.mxu0 0.0
    %152 = vmatpush.msra.mxu0 0.0
    %153 = vmatpush.msra.mxu0 0.0
    %154 = vmatpush.msra.mxu0 0.0
    %155 = vmatpush.msra.mxu0 0.0
    %156 = vmatpush.msra.mxu0 0.0
    %v157 = vand.u32 %v40, 4294901760
    %v158 = vsub.f32 %v40, %v157
    %v159 = vand.u32 %v158, 4294901760
    %160 = vmatpush.msra.mxu0 %v159
    %v161 = vand.u32 %v36, 4294901760
    %162 = vmatmul.f32.gmra.mxu0 %v161
    %v163 = vpop.f32.mrf.mxu0
    %v164 = vadd.f32 %v140, %v163
    %165 = vdwg.mxu0
    %166 = vmatpush.msra.mxu0 0.0
    %167 = vmatpush.msra.mxu0 0.0
    %168 = vmatpush.msra.mxu0 0.0
    %169 = vmatpush.msra.mxu0 0.0
    %170 = vmatpush.msra.mxu0 0.0
    %171 = vmatpush.msra.mxu0 0.0
    %172 = vmatpush.msra.mxu0 0.0
    %173 = vmatpush.msra.mxu0 0.0
    %174 = vmatpush.msra.mxu0 0.0
    %175 = vmatpush.msra.mxu0 0.0
    %176 = vmatpush.msra.mxu0 0.0
    %177 = vmatpush.msra.mxu0 0.0
    %178 = vmatpush.msra.mxu0 0.0
    %179 = vmatpush.msra.mxu0 0.0
    %180 = vmatpush.msra.mxu0 0.0
    %v181 = vand.u32 %v40, 4294901760
    %182 = vmatpush.msra.mxu0 %v181
    %v183 = vand.u32 %v36, 4294901760
    %184 = vmatmul.f32.gmra.mxu0 %v183
    %v185 = vpop.f32.mrf.mxu0
    %v186 = vadd.f32 %v164, %v185
    %187 = vdwg.mxu0
    %v188 = vmax.f32 %v186, 0.0
    %v189 = vld [vmem:[#allocation2 + $0x10] sm:$0xff]
    %v190 = vld [vmem:[#allocation2 + $0x18] sm:$0xff]
    %v191 = vld [vmem:[#allocation2 + $0x20] sm:$0xff]
    %v192 = vld [vmem:[#allocation2 + $0x28] sm:$0xff]
    %v193 = vld [vmem:[#allocation2 + $0x30] sm:$0xff]
    %v194 = vld [vmem:[#allocation2 + $0x38] sm:$0xff]
    %v195 = vld [vmem:[#allocation2 + $0x40] sm:$0xff]
    %v196 = vld [vmem:[#allocation2 + $0x48] sm:$0xff]
    %v197 = vld [vmem:[#allocation2 + $0x50] sm:$0xff]
    %v198 = vld [vmem:[#allocation2 + $0x58] sm:$0xff]
    %v199 = vld [vmem:[#allocation2 + $0x60] sm:$0xff]
    %v200 = vld [vmem:[#allocation2 + $0x68] sm:$0xff]
    %v201 = vld [vmem:[#allocation2 + $0x70] sm:$0xff]
    %v202 = vld [vmem:[#allocation2 + $0x78] sm:$0xff]
    %v203 = vld [vmem:[#allocation2 + $0x80] sm:$0xff]
    %v204 = vld [vmem:[#allocation2 + $0x88] sm:$0xff]
    %v205 = vld [vmem:[#allocation2 + $0x90] sm:$0x1]
    %v206 = vperm.slane %v205, 0
    %v207 = vand.u32 %v204, 4294901760
    %208 = vmatpush.msra.mxu0 %v207
    %v209 = vand.u32 %v203, 4294901760
    %210 = vmatpush.msra.mxu0 %v209
    %v211 = vand.u32 %v202, 4294901760
    %212 = vmatpush.msra.mxu0 %v211
    %v213 = vand.u32 %v201, 4294901760
    %214 = vmatpush.msra.mxu0 %v213
    %v215 = vand.u32 %v200, 4294901760
    %216 = vmatpush.msra.mxu0 %v215
    %v217 = vand.u32 %v199, 4294901760
    %218 = vmatpush.msra.mxu0 %v217
    %v219 = vand.u32 %v198, 4294901760
    %220 = vmatpush.msra.mxu0 %v219
    %v221 = vand.u32 %v197, 4294901760
    %222 = vmatpush.msra.mxu0 %v221
    %v223 = vand.u32 %v196, 4294901760
    %224 = vmatpush.msra.mxu0 %v223
    %v225 = vand.u32 %v195, 4294901760
    %226 = vmatpush.msra.mxu0 %v225
    %v227 = vand.u32 %v194, 4294901760
    %228 = vmatpush.msra.mxu0 %v227
    %v229 = vand.u32 %v193, 4294901760
    %230 = vmatpush.msra.mxu0 %v229
    %v231 = vand.u32 %v192, 4294901760
    %232 = vmatpush.msra.mxu0 %v231
    %v233 = vand.u32 %v191, 4294901760
    %234 = vmatpush.msra.mxu0 %v233
    %v235 = vand.u32 %v190, 4294901760
    %236 = vmatpush.msra.mxu0 %v235
    %v237 = vand.u32 %v189, 4294901760
    %238 = vmatpush.msra.mxu0 %v237
    %v239 = vand.u32 %v188, 4294901760
    %v240 = vsub.f32 %v188, %v239
    %v241 = vand.u32 %v240, 4294901760
    %v242 = vsub.f32 %v240, %v241
    %v243 = vand.u32 %v242, 4294901760
    %244 = vmatmul.f32.gmra.mxu0 %v243
    %v245 = vpop.f32.mrf.mxu0
    %v246 = vadd.f32 %v206, %v245
    %247 = vdwg.mxu0
    %v248 = vand.u32 %v204, 4294901760
    %v249 = vsub.f32 %v204, %v248
    %v250 = vand.u32 %v249, 4294901760
    %v251 = vsub.f32 %v249, %v250
    %v252 = vand.u32 %v251, 4294901760
    %253 = vmatpush.msra.mxu0 %v252
    %v254 = vand.u32 %v203, 4294901760
    %v255 = vsub.f32 %v203, %v254
    %v256 = vand.u32 %v255, 4294901760
    %v257 = vsub.f32 %v255, %v256
    %v258 = vand.u32 %v257, 4294901760
    %259 = vmatpush.msra.mxu0 %v258
    %v260 = vand.u32 %v202, 4294901760
    %v261 = vsub.f32 %v202, %v260
    %v262 = vand.u32 %v261, 4294901760
    %v263 = vsub.f32 %v261, %v262
    %v264 = vand.u32 %v263, 4294901760
    %265 = vmatpush.msra.mxu0 %v264
    %v266 = vand.u32 %v201, 4294901760
    %v267 = vsub.f32 %v201, %v266
    %v268 = vand.u32 %v267, 4294901760
    %v269 = vsub.f32 %v267, %v268
    %v270 = vand.u32 %v269, 4294901760
    %271 = vmatpush.msra.mxu0 %v270
    %v272 = vand.u32 %v200, 4294901760
    %v273 = vsub.f32 %v200, %v272
    %v274 = vand.u32 %v273, 4294901760
    %v275 = vsub.f32 %v273, %v274
    %v276 = vand.u32 %v275, 4294901760
    %277 = vmatpush.msra.mxu0 %v276
    %v278 = vand.u32 %v199, 4294901760
    %v279 = vsub.f32 %v199, %v278
    %v280 = vand.u32 %v279, 4294901760
    %v281 = vsub.f32 %v279, %v280
    %v282 = vand.u32 %v281, 4294901760
    %283 = vmatpush.msra.mxu0 %v282
    %v284 = vand.u32 %v198, 4294901760
    %v285 = vsub.f32 %v198, %v284
    %v286 = vand.u32 %v285, 4294901760
    %v287 = vsub.f32 %v285, %v286
    %v288 = vand.u32 %v287, 4294901760
    %289 = vmatpush.msra.mxu0 %v288
    %v290 = vand.u32 %v197, 4294901760
    %v291 = vsub.f32 %v197, %v290
    %v292 = vand.u32 %v291, 4294901760
    %v293 = vsub.f32 %v291, %v292
    %v294 = vand.u32 %v293, 4294901760
    %295 = vmatpush.msra.mxu0 %v294
    %v296 = vand.u32 %v196, 4294901760
    %v297 = vsub.f32 %v196, %v296
    %v298 = vand.u32 %v297, 4294901760
    %v299 = vsub.f32 %v297, %v298
    %v300 = vand.u32 %v299, 4294901760
    %301 = vmatpush.msra.mxu0 %v300
    %v302 = vand.u32 %v195, 4294901760
    %v303 = vsub.f32 %v195, %v302
    %v304 = vand.u32 %v303, 4294901760
    %v305 = vsub.f32 %v303, %v304
    %v306 = vand.u32 %v305, 4294901760
    %307 = vmatpush.msra.mxu0 %v306
    %v308 = vand.u32 %v194, 4294901760
    %v309 = vsub.f32 %v194, %v308
    %v310 = vand.u32 %v309, 4294901760
    %v311 = vsub.f32 %v309, %v310
    %v312 = vand.u32 %v311, 4294901760
    %313 = vmatpush.msra.mxu0 %v312
    %v314 = vand.u32 %v193, 4294901760
    %v315 = vsub.f32 %v193, %v314
    %v316 = vand.u32 %v315, 4294901760
    %v317 = vsub.f32 %v315, %v316
    %v318 = vand.u32 %v317, 4294901760
    %319 = vmatpush.msra.mxu0 %v318
    %v320 = vand.u32 %v192, 4294901760
    %v321 = vsub.f32 %v192, %v320
    %v322 = vand.u32 %v321, 4294901760
    %v323 = vsub.f32 %v321, %v322
    %v324 = vand.u32 %v323, 4294901760
    %325 = vmatpush.msra.mxu0 %v324
    %v326 = vand.u32 %v191, 4294901760
    %v327 = vsub.f32 %v191, %v326
    %v328 = vand.u32 %v327, 4294901760
    %v329 = vsub.f32 %v327, %v328
    %v330 = vand.u32 %v329, 4294901760
    %331 = vmatpush.msra.mxu0 %v330
    %v332 = vand.u32 %v190, 4294901760
    %v333 = vsub.f32 %v190, %v332
    %v334 = vand.u32 %v333, 4294901760
    %v335 = vsub.f32 %v333, %v334
    %v336 = vand.u32 %v335, 4294901760
    %337 = vmatpush.msra.mxu0 %v336
    %v338 = vand.u32 %v189, 4294901760
    %v339 = vsub.f32 %v189, %v338
    %v340 = vand.u32 %v339, 4294901760
    %v341 = vsub.f32 %v339, %v340
    %v342 = vand.u32 %v341, 4294901760
    %343 = vmatpush.msra.mxu0 %v342
    %v344 = vand.u32 %v188, 4294901760
    %345 = vmatmul.f32.gmra.mxu0 %v344
    %v346 = vpop.f32.mrf.mxu0
    %v347 = vadd.f32 %v246, %v346
    %348 = vdwg.mxu0
    %v349 = vand.u32 %v204, 4294901760
    %v350 = vsub.f32 %v204, %v349
    %351 = vmatpush.msra.mxu0 %v350
    %v352 = vand.u32 %v203, 4294901760
    %v353 = vsub.f32 %v203, %v352
    %354 = vmatpush.msra.mxu0 %v353
    %v355 = vand.u32 %v202, 4294901760
    %v356 = vsub.f32 %v202, %v355
    %357 = vmatpush.msra.mxu0 %v356
    %v358 = vand.u32 %v201, 4294901760
    %v359 = vsub.f32 %v201, %v358
    %360 = vmatpush.msra.mxu0 %v359
    %v361 = vand.u32 %v200, 4294901760
    %v362 = vsub.f32 %v200, %v361
    %363 = vmatpush.msra.mxu0 %v362
    %v364 = vand.u32 %v199, 4294901760
    %v365 = vsub.f32 %v199, %v364
    %366 = vmatpush.msra.mxu0 %v365
    %v367 = vand.u32 %v198, 4294901760
    %v368 = vsub.f32 %v198, %v367
    %369 = vmatpush.msra.mxu0 %v368
    %v370 = vand.u32 %v197, 4294901760
    %v371 = vsub.f32 %v197, %v370
    %372 = vmatpush.msra.mxu0 %v371
    %v373 = vand.u32 %v196, 4294901760
    %v374 = vsub.f32 %v196, %v373
    %375 = vmatpush.msra.mxu0 %v374
    %v376 = vand.u32 %v195, 4294901760
    %v377 = vsub.f32 %v195, %v376
    %378 = vmatpush.msra.mxu0 %v377
    %v379 = vand.u32 %v194, 4294901760
    %v380 = vsub.f32 %v194, %v379
    %381 = vmatpush.msra.mxu0 %v380
    %v382 = vand.u32 %v193, 4294901760
    %v383 = vsub.f32 %v193, %v382
    %384 = vmatpush.msra.mxu0 %v383
    %v385 = vand.u32 %v192, 4294901760
    %v386 = vsub.f32 %v192, %v385
    %387 = vmatpush.msra.mxu0 %v386
    %v388 = vand.u32 %v191, 4294901760
    %v389 = vsub.f32 %v191, %v388
    %390 = vmatpush.msra.mxu0 %v389
    %v391 = vand.u32 %v190, 4294901760
    %v392 = vsub.f32 %v190, %v391
    %393 = vmatpush.msra.mxu0 %v392
    %v394 = vand.u32 %v189, 4294901760
    %v395 = vsub.f32 %v189, %v394
    %396 = vmatpush.msra.mxu0 %v395
    %v397 = vand.u32 %v188, 4294901760
    %v398 = vsub.f32 %v188, %v397
    %399 = vmatmul.f32.gmra.mxu0 %v398
    %v400 = vpop.f32.mrf.mxu0
    %v401 = vadd.f32 %v347, %v400
    %402 = vdwg.mxu0
    %v403 = vand.u32 %v204, 4294901760
    %404 = vmatpush.msra.mxu0 %v403
    %v405 = vand.u32 %v203, 4294901760
    %406 = vmatpush.msra.mxu0 %v405
    %v407 = vand.u32 %v202, 4294901760
    %408 = vmatpush.msra.mxu0 %v407
    %v409 = vand.u32 %v201, 4294901760
    %410 = vmatpush.msra.mxu0 %v409
    %v411 = vand.u32 %v200, 4294901760
    %412 = vmatpush.msra.mxu0 %v411
    %v413 = vand.u32 %v199, 4294901760
    %414 = vmatpush.msra.mxu0 %v413
    %v415 = vand.u32 %v198, 4294901760
    %416 = vmatpush.msra.mxu0 %v415
    %v417 = vand.u32 %v197, 4294901760
    %418 = vmatpush.msra.mxu0 %v417
    %v419 = vand.u32 %v196, 4294901760
    %420 = vmatpush.msra.mxu0 %v419
    %v421 = vand.u32 %v195, 4294901760
    %422 = vmatpush.msra.mxu0 %v421
    %v423 = vand.u32 %v194, 4294901760
    %424 = vmatpush.msra.mxu0 %v423
    %v425 = vand.u32 %v193, 4294901760
    %426 = vmatpush.msra.mxu0 %v425
    %v427 = vand.u32 %v192, 4294901760
    %428 = vmatpush.msra.mxu0 %v427
    %v429 = vand.u32 %v191, 4294901760
    %430 = vmatpush.msra.mxu0 %v429
    %v431 = vand.u32 %v190, 4294901760
    %432 = vmatpush.msra.mxu0 %v431
    %v433 = vand.u32 %v189, 4294901760
    %434 = vmatpush.msra.mxu0 %v433
    %v435 = vand.u32 %v188, 4294901760
    %v436 = vsub.f32 %v188, %v435
    %v437 = vand.u32 %v436, 4294901760
    %438 = vmatmul.f32.gmra.mxu0 %v437
    %v439 = vpop.f32.mrf.mxu0
    %v440 = vadd.f32 %v401, %v439
    %441 = vdwg.mxu0
    %v442 = vand.u32 %v204, 4294901760
    %v443 = vsub.f32 %v204, %v442
    %v444 = vand.u32 %v443, 4294901760
    %445 = vmatpush.msra.mxu0 %v444
    %v446 = vand.u32 %v203, 4294901760
    %v447 = vsub.f32 %v203, %v446
    %v448 = vand.u32 %v447, 4294901760
    %449 = vmatpush.msra.mxu0 %v448
    %v450 = vand.u32 %v202, 4294901760
    %v451 = vsub.f32 %v202, %v450
    %v452 = vand.u32 %v451, 4294901760
    %453 = vmatpush.msra.mxu0 %v452
    %v454 = vand.u32 %v201, 4294901760
    %v455 = vsub.f32 %v201, %v454
    %v456 = vand.u32 %v455, 4294901760
    %457 = vmatpush.msra.mxu0 %v456
    %v458 = vand.u32 %v200, 4294901760
    %v459 = vsub.f32 %v200, %v458
    %v460 = vand.u32 %v459, 4294901760
    %461 = vmatpush.msra.mxu0 %v460
    %v462 = vand.u32 %v199, 4294901760
    %v463 = vsub.f32 %v199, %v462
    %v464 = vand.u32 %v463, 4294901760
    %465 = vmatpush.msra.mxu0 %v464
    %v466 = vand.u32 %v198, 4294901760
    %v467 = vsub.f32 %v198, %v466
    %v468 = vand.u32 %v467, 4294901760
    %469 = vmatpush.msra.mxu0 %v468
    %v470 = vand.u32 %v197, 4294901760
    %v471 = vsub.f32 %v197, %v470
    %v472 = vand.u32 %v471, 4294901760
    %473 = vmatpush.msra.mxu0 %v472
    %v474 = vand.u32 %v196, 4294901760
    %v475 = vsub.f32 %v196, %v474
    %v476 = vand.u32 %v475, 4294901760
    %477 = vmatpush.msra.mxu0 %v476
    %v478 = vand.u32 %v195, 4294901760
    %v479 = vsub.f32 %v195, %v478
    %v480 = vand.u32 %v479, 4294901760
    %481 = vmatpush.msra.mxu0 %v480
    %v482 = vand.u32 %v194, 4294901760
    %v483 = vsub.f32 %v194, %v482
    %v484 = vand.u32 %v483, 4294901760
    %485 = vmatpush.msra.mxu0 %v484
    %v486 = vand.u32 %v193, 4294901760
    %v487 = vsub.f32 %v193, %v486
    %v488 = vand.u32 %v487, 4294901760
    %489 = vmatpush.msra.mxu0 %v488
    %v490 = vand.u32 %v192, 4294901760
    %v491 = vsub.f32 %v192, %v490
    %v492 = vand.u32 %v491, 4294901760
    %493 = vmatpush.msra.mxu0 %v492
    %v494 = vand.u32 %v191, 4294901760
    %v495 = vsub.f32 %v191, %v494
    %v496 = vand.u32 %v495, 4294901760
    %497 = vmatpush.msra.mxu0 %v496
    %v498 = vand.u32 %v190, 4294901760
    %v499 = vsub.f32 %v190, %v498
    %v500 = vand.u32 %v499, 4294901760
    %501 = vmatpush.msra.mxu0 %v500
    %v502 = vand.u32 %v189, 4294901760
    %v503 = vsub.f32 %v189, %v502
    %v504 = vand.u32 %v503, 4294901760
    %505 = vmatpush.msra.mxu0 %v504
    %v506 = vand.u32 %v188, 4294901760
    %507 = vmatmul.f32.gmra.mxu0 %v506
    %v508 = vpop.f32.mrf.mxu0
    %v509 = vadd.f32 %v440, %v508
    %510 = vdwg.mxu0
    %v511 = vand.u32 %v204, 4294901760
    %512 = vmatpush.msra.mxu0 %v511
    %v513 = vand.u32 %v203, 4294901760
    %514 = vmatpush.msra.mxu0 %v513
    %v515 = vand.u32 %v202, 4294901760
    %516 = vmatpush.msra.mxu0 %v515
    %v517 = vand.u32 %v201, 4294901760
    %518 = vmatpush.msra.mxu0 %v517
    %v519 = vand.u32 %v200, 4294901760
    %520 = vmatpush.msra.mxu0 %v519
    %v521 = vand.u32 %v199, 4294901760
    %522 = vmatpush.msra.mxu0 %v521
    %v523 = vand.u32 %v198, 4294901760
    %524 = vmatpush.msra.mxu0 %v523
    %v525 = vand.u32 %v197, 4294901760
    %526 = vmatpush.msra.mxu0 %v525
    %v527 = vand.u32 %v196, 4294901760
    %528 = vmatpush.msra.mxu0 %v527
    %v529 = vand.u32 %v195, 4294901760
    %530 = vmatpush.msra.mxu0 %v529
    %v531 = vand.u32 %v194, 4294901760
    %532 = vmatpush.msra.mxu0 %v531
    %v533 = vand.u32 %v193, 4294901760
    %534 = vmatpush.msra.mxu0 %v533
    %v535 = vand.u32 %v192, 4294901760
    %536 = vmatpush.msra.mxu0 %v535
    %v537 = vand.u32 %v191, 4294901760
    %538 = vmatpush.msra.mxu0 %v537
    %v539 = vand.u32 %v190, 4294901760
    %540 = vmatpush.msra.mxu0 %v539
    %v541 = vand.u32 %v189, 4294901760
    %542 = vmatpush.msra.mxu0 %v541
    %v543 = vand.u32 %v188, 4294901760
    %544 = vmatmul.f32.gmra.mxu0 %v543
    %v545 = vpop.f32.mrf.mxu0
    %v546 = vadd.f32 %v509, %v545
    %547 = vdwg.mxu0
    %v548 = vmax.f32 %v546, 0.0
    %v549 = vld [vmem:[#allocation2 + $0x98] sm:$0xff]
    %v550 = vld [vmem:[#allocation2 + $0xa0] sm:$0xff]
    %v551 = vld [vmem:[#allocation2 + $0xa8] sm:$0xff]
    %v552 = vld [vmem:[#allocation2 + $0xb0] sm:$0xff]
    %v553 = vld [vmem:[#allocation2 + $0xb8] sm:$0xff]
    %v554 = vld [vmem:[#allocation2 + $0xc0] sm:$0xff]
    %v555 = vld [vmem:[#allocation2 + $0xc8] sm:$0xff]
    %v556 = vld [vmem:[#allocation2 + $0xd0] sm:$0xff]
    %v557 = vld [vmem:[#allocation2 + $0xd8] sm:$0xff]
    %v558 = vld [vmem:[#allocation2 + $0xe0] sm:$0xff]
    %v559 = vld [vmem:[#allocation2 + $0xe8] sm:$0xff]
    %v560 = vld [vmem:[#allocation2 + $0xf0] sm:$0xff]
    %v561 = vld [vmem:[#allocation2 + $0xf8] sm:$0xff]
    %v562 = vld [vmem:[#allocation2 + $0x100] sm:$0xff]
    %v563 = vld [vmem:[#allocation2 + $0x108] sm:$0xff]
    %v564 = vld [vmem:[#allocation2 + $0x110] sm:$0xff]
    %v565 = vld [vmem:[#allocation2 + $0x118] sm:$0x1]
    %v566 = vperm.slane %v565, 0
    %v567 = vand.u32 %v564, 4294901760
    %568 = vmatpush.msra.mxu0 %v567
    %v569 = vand.u32 %v563, 4294901760
    %570 = vmatpush.msra.mxu0 %v569
    %v571 = vand.u32 %v562, 4294901760
    %572 = vmatpush.msra.mxu0 %v571
    %v573 = vand.u32 %v561, 4294901760
    %574 = vmatpush.msra.mxu0 %v573
    %v575 = vand.u32 %v560, 4294901760
    %576 = vmatpush.msra.mxu0 %v575
    %v577 = vand.u32 %v559, 4294901760
    %578 = vmatpush.msra.mxu0 %v577
    %v579 = vand.u32 %v558, 4294901760
    %580 = vmatpush.msra.mxu0 %v579
    %v581 = vand.u32 %v557, 4294901760
    %582 = vmatpush.msra.mxu0 %v581
    %v583 = vand.u32 %v556, 4294901760
    %584 = vmatpush.msra.mxu0 %v583
    %v585 = vand.u32 %v555, 4294901760
    %586 = vmatpush.msra.mxu0 %v585
    %v587 = vand.u32 %v554, 4294901760
    %588 = vmatpush.msra.mxu0 %v587
    %v589 = vand.u32 %v553, 4294901760
    %590 = vmatpush.msra.mxu0 %v589
    %v591 = vand.u32 %v552, 4294901760
    %592 = vmatpush.msra.mxu0 %v591
    %v593 = vand.u32 %v551, 4294901760
    %594 = vmatpush.msra.mxu0 %v593
    %v595 = vand.u32 %v550, 4294901760
    %596 = vmatpush.msra.mxu0 %v595
    %v597 = vand.u32 %v549, 4294901760
    %598 = vmatpush.msra.mxu0 %v597
    %v599 = vand.u32 %v548, 4294901760
    %v600 = vsub.f32 %v548, %v599
    %v601 = vand.u32 %v600, 4294901760
    %v602 = vsub.f32 %v600, %v601
    %v603 = vand.u32 %v602, 4294901760
    %604 = vmatmul.f32.gmra.mxu0 %v603
    %v605 = vpop.f32.mrf.mxu0
    %v606 = vadd.f32 %v566, %v605
    %607 = vdwg.mxu0
    %v608 = vand.u32 %v564, 4294901760
    %v609 = vsub.f32 %v564, %v608
    %v610 = vand.u32 %v609, 4294901760
    %v611 = vsub.f32 %v609, %v610
    %v612 = vand.u32 %v611, 4294901760
    %613 = vmatpush.msra.mxu0 %v612
    %v614 = vand.u32 %v563, 4294901760
    %v615 = vsub.f32 %v563, %v614
    %v616 = vand.u32 %v615, 4294901760
    %v617 = vsub.f32 %v615, %v616
    %v618 = vand.u32 %v617, 4294901760
    %619 = vmatpush.msra.mxu0 %v618
    %v620 = vand.u32 %v562, 4294901760
    %v621 = vsub.f32 %v562, %v620
    %v622 = vand.u32 %v621, 4294901760
    %v623 = vsub.f32 %v621, %v622
    %v624 = vand.u32 %v623, 4294901760
    %625 = vmatpush.msra.mxu0 %v624
    %v626 = vand.u32 %v561, 4294901760
    %v627 = vsub.f32 %v561, %v626
    %v628 = vand.u32 %v627, 4294901760
    %v629 = vsub.f32 %v627, %v628
    %v630 = vand.u32 %v629, 4294901760
    %631 = vmatpush.msra.mxu0 %v630
    %v632 = vand.u32 %v560, 4294901760
    %v633 = vsub.f32 %v560, %v632
    %v634 = vand.u32 %v633, 4294901760
    %v635 = vsub.f32 %v633, %v634
    %v636 = vand.u32 %v635, 4294901760
    %637 = vmatpush.msra.mxu0 %v636
    %v638 = vand.u32 %v559, 4294901760
    %v639 = vsub.f32 %v559, %v638
    %v640 = vand.u32 %v639, 4294901760
    %v641 = vsub.f32 %v639, %v640
    %v642 = vand.u32 %v641, 4294901760
    %643 = vmatpush.msra.mxu0 %v642
    %v644 = vand.u32 %v558, 4294901760
    %v645 = vsub.f32 %v558, %v644
    %v646 = vand.u32 %v645, 4294901760
    %v647 = vsub.f32 %v645, %v646
    %v648 = vand.u32 %v647, 4294901760
    %649 = vmatpush.msra.mxu0 %v648
    %v650 = vand.u32 %v557, 4294901760
    %v651 = vsub.f32 %v557, %v650
    %v652 = vand.u32 %v651, 4294901760
    %v653 = vsub.f32 %v651, %v652
    %v654 = vand.u32 %v653, 4294901760
    %655 = vmatpush.msra.mxu0 %v654
    %v656 = vand.u32 %v556, 4294901760
    %v657 = vsub.f32 %v556, %v656
    %v658 = vand.u32 %v657, 4294901760
    %v659 = vsub.f32 %v657, %v658
    %v660 = vand.u32 %v659, 4294901760
    %661 = vmatpush.msra.mxu0 %v660
    %v662 = vand.u32 %v555, 4294901760
    %v663 = vsub.f32 %v555, %v662
    %v664 = vand.u32 %v663, 4294901760
    %v665 = vsub.f32 %v663, %v664
    %v666 = vand.u32 %v665, 4294901760
    %667 = vmatpush.msra.mxu0 %v666
    %v668 = vand.u32 %v554, 4294901760
    %v669 = vsub.f32 %v554, %v668
    %v670 = vand.u32 %v669, 4294901760
    %v671 = vsub.f32 %v669, %v670
    %v672 = vand.u32 %v671, 4294901760
    %673 = vmatpush.msra.mxu0 %v672
    %v674 = vand.u32 %v553, 4294901760
    %v675 = vsub.f32 %v553, %v674
    %v676 = vand.u32 %v675, 4294901760
    %v677 = vsub.f32 %v675, %v676
    %v678 = vand.u32 %v677, 4294901760
    %679 = vmatpush.msra.mxu0 %v678
    %v680 = vand.u32 %v552, 4294901760
    %v681 = vsub.f32 %v552, %v680
    %v682 = vand.u32 %v681, 4294901760
    %v683 = vsub.f32 %v681, %v682
    %v684 = vand.u32 %v683, 4294901760
    %685 = vmatpush.msra.mxu0 %v684
    %v686 = vand.u32 %v551, 4294901760
    %v687 = vsub.f32 %v551, %v686
    %v688 = vand.u32 %v687, 4294901760
    %v689 = vsub.f32 %v687, %v688
    %v690 = vand.u32 %v689, 4294901760
    %691 = vmatpush.msra.mxu0 %v690
    %v692 = vand.u32 %v550, 4294901760
    %v693 = vsub.f32 %v550, %v692
    %v694 = vand.u32 %v693, 4294901760
    %v695 = vsub.f32 %v693, %v694
    %v696 = vand.u32 %v695, 4294901760
    %697 = vmatpush.msra.mxu0 %v696
    %v698 = vand.u32 %v549, 4294901760
    %v699 = vsub.f32 %v549, %v698
    %v700 = vand.u32 %v699, 4294901760
    %v701 = vsub.f32 %v699, %v700
    %v702 = vand.u32 %v701, 4294901760
    %703 = vmatpush.msra.mxu0 %v702
    %v704 = vand.u32 %v548, 4294901760
    %705 = vmatmul.f32.gmra.mxu0 %v704
    %v706 = vpop.f32.mrf.mxu0
    %v707 = vadd.f32 %v606, %v706
    %708 = vdwg.mxu0
    %v709 = vand.u32 %v564, 4294901760
    %v710 = vsub.f32 %v564, %v709
    %711 = vmatpush.msra.mxu0 %v710
    %v712 = vand.u32 %v563, 4294901760
    %v713 = vsub.f32 %v563, %v712
    %714 = vmatpush.msra.mxu0 %v713
    %v715 = vand.u32 %v562, 4294901760
    %v716 = vsub.f32 %v562, %v715
    %717 = vmatpush.msra.mxu0 %v716
    %v718 = vand.u32 %v561, 4294901760
    %v719 = vsub.f32 %v561, %v718
    %720 = vmatpush.msra.mxu0 %v719
    %v721 = vand.u32 %v560, 4294901760
    %v722 = vsub.f32 %v560, %v721
    %723 = vmatpush.msra.mxu0 %v722
    %v724 = vand.u32 %v559, 4294901760
    %v725 = vsub.f32 %v559, %v724
    %726 = vmatpush.msra.mxu0 %v725
    %v727 = vand.u32 %v558, 4294901760
    %v728 = vsub.f32 %v558, %v727
    %729 = vmatpush.msra.mxu0 %v728
    %v730 = vand.u32 %v557, 4294901760
    %v731 = vsub.f32 %v557, %v730
    %732 = vmatpush.msra.mxu0 %v731
    %v733 = vand.u32 %v556, 4294901760
    %v734 = vsub.f32 %v556, %v733
    %735 = vmatpush.msra.mxu0 %v734
    %v736 = vand.u32 %v555, 4294901760
    %v737 = vsub.f32 %v555, %v736
    %738 = vmatpush.msra.mxu0 %v737
    %v739 = vand.u32 %v554, 4294901760
    %v740 = vsub.f32 %v554, %v739
    %741 = vmatpush.msra.mxu0 %v740
    %v742 = vand.u32 %v553, 4294901760
    %v743 = vsub.f32 %v553, %v742
    %744 = vmatpush.msra.mxu0 %v743
    %v745 = vand.u32 %v552, 4294901760
    %v746 = vsub.f32 %v552, %v745
    %747 = vmatpush.msra.mxu0 %v746
    %v748 = vand.u32 %v551, 4294901760
    %v749 = vsub.f32 %v551, %v748
    %750 = vmatpush.msra.mxu0 %v749
    %v751 = vand.u32 %v550, 4294901760
    %v752 = vsub.f32 %v550, %v751
    %753 = vmatpush.msra.mxu0 %v752
    %v754 = vand.u32 %v549, 4294901760
    %v755 = vsub.f32 %v549, %v754
    %756 = vmatpush.msra.mxu0 %v755
    %v757 = vand.u32 %v548, 4294901760
    %v758 = vsub.f32 %v548, %v757
    %759 = vmatmul.f32.gmra.mxu0 %v758
    %v760 = vpop.f32.mrf.mxu0
    %v761 = vadd.f32 %v707, %v760
    %762 = vdwg.mxu0
    %v763 = vand.u32 %v564, 4294901760
    %764 = vmatpush.msra.mxu0 %v763
    %v765 = vand.u32 %v563, 4294901760
    %766 = vmatpush.msra.mxu0 %v765
    %v767 = vand.u32 %v562, 4294901760
    %768 = vmatpush.msra.mxu0 %v767
    %v769 = vand.u32 %v561, 4294901760
    %770 = vmatpush.msra.mxu0 %v769
    %v771 = vand.u32 %v560, 4294901760
    %772 = vmatpush.msra.mxu0 %v771
    %v773 = vand.u32 %v559, 4294901760
    %774 = vmatpush.msra.mxu0 %v773
    %v775 = vand.u32 %v558, 4294901760
    %776 = vmatpush.msra.mxu0 %v775
    %v777 = vand.u32 %v557, 4294901760
    %778 = vmatpush.msra.mxu0 %v777
    %v779 = vand.u32 %v556, 4294901760
    %780 = vmatpush.msra.mxu0 %v779
    %v781 = vand.u32 %v555, 4294901760
    %782 = vmatpush.msra.mxu0 %v781
    %v783 = vand.u32 %v554, 4294901760
    %784 = vmatpush.msra.mxu0 %v783
    %v785 = vand.u32 %v553, 4294901760
    %786 = vmatpush.msra.mxu0 %v785
    %v787 = vand.u32 %v552, 4294901760
    %788 = vmatpush.msra.mxu0 %v787
    %v789 = vand.u32 %v551, 4294901760
    %790 = vmatpush.msra.mxu0 %v789
    %v791 = vand.u32 %v550, 4294901760
    %792 = vmatpush.msra.mxu0 %v791
    %v793 = vand.u32 %v549, 4294901760
    %794 = vmatpush.msra.mxu0 %v793
    %v795 = vand.u32 %v548, 4294901760
    %v796 = vsub.f32 %v548, %v795
    %v797 = vand.u32 %v796, 4294901760
    %798 = vmatmul.f32.gmra.mxu0 %v797
    %v799 = vpop.f32.mrf.mxu0
    %v800 = vadd.f32 %v761, %v799
    %801 = vdwg.mxu0
    %v802 = vand.u32 %v564, 4294901760
    %v803 = vsub.f32 %v564, %v802
    %v804 = vand.u32 %v803, 4294901760
    %805 = vmatpush.msra.mxu0 %v804
    %v806 = vand.u32 %v563, 4294901760
    %v807 = vsub.f32 %v563, %v806
    %v808 = vand.u32 %v807, 4294901760
    %809 = vmatpush.msra.mxu0 %v808
    %v810 = vand.u32 %v562, 4294901760
    %v811 = vsub.f32 %v562, %v810
    %v812 = vand.u32 %v811, 4294901760
    %813 = vmatpush.msra.mxu0 %v812
    %v814 = vand.u32 %v561, 4294901760
    %v815 = vsub.f32 %v561, %v814
    %v816 = vand.u32 %v815, 4294901760
    %817 = vmatpush.msra.mxu0 %v816
    %v818 = vand.u32 %v560, 4294901760
    %v819 = vsub.f32 %v560, %v818
    %v820 = vand.u32 %v819, 4294901760
    %821 = vmatpush.msra.mxu0 %v820
    %v822 = vand.u32 %v559, 4294901760
    %v823 = vsub.f32 %v559, %v822
    %v824 = vand.u32 %v823, 4294901760
    %825 = vmatpush.msra.mxu0 %v824
    %v826 = vand.u32 %v558, 4294901760
    %v827 = vsub.f32 %v558, %v826
    %v828 = vand.u32 %v827, 4294901760
    %829 = vmatpush.msra.mxu0 %v828
    %v830 = vand.u32 %v557, 4294901760
    %v831 = vsub.f32 %v557, %v830
    %v832 = vand.u32 %v831, 4294901760
    %833 = vmatpush.msra.mxu0 %v832
    %v834 = vand.u32 %v556, 4294901760
    %v835 = vsub.f32 %v556, %v834
    %v836 = vand.u32 %v835, 4294901760
    %837 = vmatpush.msra.mxu0 %v836
    %v838 = vand.u32 %v555, 4294901760
    %v839 = vsub.f32 %v555, %v838
    %v840 = vand.u32 %v839, 4294901760
    %841 = vmatpush.msra.mxu0 %v840
    %v842 = vand.u32 %v554, 4294901760
    %v843 = vsub.f32 %v554, %v842
    %v844 = vand.u32 %v843, 4294901760
    %845 = vmatpush.msra.mxu0 %v844
    %v846 = vand.u32 %v553, 4294901760
    %v847 = vsub.f32 %v553, %v846
    %v848 = vand.u32 %v847, 4294901760
    %849 = vmatpush.msra.mxu0 %v848
    %v850 = vand.u32 %v552, 4294901760
    %v851 = vsub.f32 %v552, %v850
    %v852 = vand.u32 %v851, 4294901760
    %853 = vmatpush.msra.mxu0 %v852
    %v854 = vand.u32 %v551, 4294901760
    %v855 = vsub.f32 %v551, %v854
    %v856 = vand.u32 %v855, 4294901760
    %857 = vmatpush.msra.mxu0 %v856
    %v858 = vand.u32 %v550, 4294901760
    %v859 = vsub.f32 %v550, %v858
    %v860 = vand.u32 %v859, 4294901760
    %861 = vmatpush.msra.mxu0 %v860
    %v862 = vand.u32 %v549, 4294901760
    %v863 = vsub.f32 %v549, %v862
    %v864 = vand.u32 %v863, 4294901760
    %865 = vmatpush.msra.mxu0 %v864
    %v866 = vand.u32 %v548, 4294901760
    %867 = vmatmul.f32.gmra.mxu0 %v866
    %v868 = vpop.f32.mrf.mxu0
    %v869 = vadd.f32 %v800, %v868
    %870 = vdwg.mxu0
    %v871 = vand.u32 %v564, 4294901760
    %872 = vmatpush.msra.mxu0 %v871
    %v873 = vand.u32 %v563, 4294901760
    %874 = vmatpush.msra.mxu0 %v873
    %v875 = vand.u32 %v562, 4294901760
    %876 = vmatpush.msra.mxu0 %v875
    %v877 = vand.u32 %v561, 4294901760
    %878 = vmatpush.msra.mxu0 %v877
    %v879 = vand.u32 %v560, 4294901760
    %880 = vmatpush.msra.mxu0 %v879
    %v881 = vand.u32 %v559, 4294901760
    %882 = vmatpush.msra.mxu0 %v881
    %v883 = vand.u32 %v558, 4294901760
    %884 = vmatpush.msra.mxu0 %v883
    %v885 = vand.u32 %v557, 4294901760
    %886 = vmatpush.msra.mxu0 %v885
    %v887 = vand.u32 %v556, 4294901760
    %888 = vmatpush.msra.mxu0 %v887
    %v889 = vand.u32 %v555, 4294901760
    %890 = vmatpush.msra.mxu0 %v889
    %v891 = vand.u32 %v554, 4294901760
    %892 = vmatpush.msra.mxu0 %v891
    %v893 = vand.u32 %v553, 4294901760
    %894 = vmatpush.msra.mxu0 %v893
    %v895 = vand.u32 %v552, 4294901760
    %896 = vmatpush.msra.mxu0 %v895
    %v897 = vand.u32 %v551, 4294901760
    %898 = vmatpush.msra.mxu0 %v897
    %v899 = vand.u32 %v550, 4294901760
    %900 = vmatpush.msra.mxu0 %v899
    %v901 = vand.u32 %v549, 4294901760
    %902 = vmatpush.msra.mxu0 %v901
    %v903 = vand.u32 %v548, 4294901760
    %904 = vmatmul.f32.gmra.mxu0 %v903
    %v905 = vpop.f32.mrf.mxu0
    %v906 = vadd.f32 %v869, %v905
    %907 = vdwg.mxu0
    %vm908 = vcmp.ge.f32.partialorder %v906, 0.0
    %v909 = vmul.f32 %v906, 0.01
    %v910 = vsel %vm908, %v906, %v909
    %911 = vst [vmem:[%s3] sm:$0xff] %v910
    %v912 = vlaneseq
    %v913 = vand.u32 %v912, 127
    %v914 = vcvt.s32.f32 %v913
    %v915 = vmul.f32 %v914, 0.03515625
    %v916 = vadd.f32 %v915, 0.5
    %v917 = vmul.f32 %v916, %v916
    %v918 = vmul.f32 %v910, 0.1
    %v919 = vmul.f32 %v910, %v910
    %921 = vset.pattern.permute.xlu0 8
    %922 = vperm.xlu0 %921, %v918
    %v923 = vpop.permute.xlu0 %922
    %v925 = vmul.f32 %v923, %v916
    %927 = vset.pattern.permute.xlu0 4
    %928 = vperm.xlu0 %927, %v919
    %v929 = vpop.permute.xlu0 %928
    %v931 = vmul.f32 %v929, %v925
    %932 = vset.pattern.permute.xlu0 0
    %933 = vperm.xlu0 %932, %v919
    %v934 = vpop.permute.xlu0 %933
    %v936 = vsub.f32 %v934, %v917
    %v937 = vmul.f32 %v936, %v936
    %v938 = vmul.f32 %v918, %v918
    %940 = vset.pattern.permute.xlu0 8
    %941 = vperm.xlu0 %940, %v938
    %v942 = vpop.permute.xlu0 %941
    %v944 = vmul.f32 %v917, %v942
    %v945 = vadd.f32 %v937, %v944
    %v946 = vrcp.pop %v945
    %v947 = vmul.f32 %v945, %v946
    %v948 = vsub.f32 1.0, %v947
    %v949 = vmul.f32 %v946, %v948
    %v950 = vadd.f32 %v946, %v949
    %vm951 = vweird.f32 %v945
    %vm952 = vweird.f32 %v946
    %vm953 = vmor %vm951, %vm952
    %v954 = vsel %vm953, %v946, %v950
    %v955 = vand.u32 2147483647, %v945
    %vm956 = vcmp.eq.f32.partialorder %v955, 8.507059e+37
    %v957 = vand.u32 %v945, 2147483648
    %v958 = vor.u32 1.1754944e-38, %v957
    %v959 = vsel %vm956, %v958, %v954
    %v960 = vmul.f32 %v931, %v959
    %v961 = vadd.f32 %v960, 0.0
    %962 = vset.pattern.permute.xlu0 9
    %963 = vperm.xlu0 %962, %v918
    %v964 = vpop.permute.xlu0 %963
    %v966 = vmul.f32 %v964, %v916
    %967 = vset.pattern.permute.xlu0 5
    %968 = vperm.xlu0 %967, %v919
    %v969 = vpop.permute.xlu0 %968
    %v971 = vmul.f32 %v969, %v966
    %972 = vset.pattern.permute.xlu0 1
    %973 = vperm.xlu0 %972, %v919
    %v974 = vpop.permute.xlu0 %973
    %v976 = vsub.f32 %v974, %v917
    %v977 = vmul.f32 %v976, %v976
    %978 = vset.pattern.permute.xlu0 9
    %979 = vperm.xlu0 %978, %v938
    %v980 = vpop.permute.xlu0 %979
    %v982 = vmul.f32 %v917, %v980
    %v983 = vadd.f32 %v977, %v982
    %v984 = vrcp.pop %v983
    %v985 = vmul.f32 %v983, %v984
    %v986 = vsub.f32 1.0, %v985
    %v987 = vmul.f32 %v984, %v986
    %v988 = vadd.f32 %v984, %v987
    %vm989 = vweird.f32 %v983
    %vm990 = vweird.f32 %v984
    %vm991 = vmor %vm989, %vm990
    %v992 = vsel %vm991, %v984, %v988
    %v993 = vand.u32 2147483647, %v983
    %vm994 = vcmp.eq.f32.partialorder %v993, 8.507059e+37
    %v995 = vand.u32 %v983, 2147483648
    %v996 = vor.u32 1.1754944e-38, %v995
    %v997 = vsel %vm994, %v996, %v992
    %v998 = vmul.f32 %v971, %v997
    %v999 = vadd.f32 %v961, %v998
    %1000 = vset.pattern.permute.xlu0 10
    %1001 = vperm.xlu0 %1000, %v918
    %v1002 = vpop.permute.xlu0 %1001
    %v1004 = vmul.f32 %v1002, %v916
    %1005 = vset.pattern.permute.xlu0 6
    %1006 = vperm.xlu0 %1005, %v919
    %v1007 = vpop.permute.xlu0 %1006
    %v1009 = vmul.f32 %v1007, %v1004
    %1010 = vset.pattern.permute.xlu0 2
    %1011 = vperm.xlu0 %1010, %v919
    %v1012 = vpop.permute.xlu0 %1011
    %v1014 = vsub.f32 %v1012, %v917
    %v1015 = vmul.f32 %v1014, %v1014
    %1016 = vset.pattern.permute.xlu0 10
    %1017 = vperm.xlu0 %1016, %v938
    %v1018 = vpop.permute.xlu0 %1017
    %v1020 = vmul.f32 %v917, %v1018
    %v1021 = vadd.f32 %v1015, %v1020
    %v1022 = vrcp.pop %v1021
    %v1023 = vmul.f32 %v1021, %v1022
    %v1024 = vsub.f32 1.0, %v1023
    %v1025 = vmul.f32 %v1022, %v1024
    %v1026 = vadd.f32 %v1022, %v1025
    %vm1027 = vweird.f32 %v1021
    %vm1028 = vweird.f32 %v1022
    %vm1029 = vmor %vm1027, %vm1028
    %v1030 = vsel %vm1029, %v1022, %v1026
    %v1031 = vand.u32 2147483647, %v1021
    %vm1032 = vcmp.eq.f32.partialorder %v1031, 8.507059e+37
    %v1033 = vand.u32 %v1021, 2147483648
    %v1034 = vor.u32 1.1754944e-38, %v1033
    %v1035 = vsel %vm1032, %v1034, %v1030
    %v1036 = vmul.f32 %v1009, %v1035
    %v1037 = vadd.f32 %v999, %v1036
    %1038 = vset.pattern.permute.xlu0 11
    %1039 = vperm.xlu0 %1038, %v918
    %v1040 = vpop.permute.xlu0 %1039
    %v1042 = vmul.f32 %v1040, %v916
    %1043 = vset.pattern.permute.xlu0 7
    %1044 = vperm.xlu0 %1043, %v919
    %v1045 = vpop.permute.xlu0 %1044
    %v1047 = vmul.f32 %v1045, %v1042
    %1048 = vset.pattern.permute.xlu0 3
    %1049 = vperm.xlu0 %1048, %v919
    %v1050 = vpop.permute.xlu0 %1049
    %v1052 = vsub.f32 %v1050, %v917
    %v1053 = vmul.f32 %v1052, %v1052
    %1054 = vset.pattern.permute.xlu0 11
    %1055 = vperm.xlu0 %1054, %v938
    %v1056 = vpop.permute.xlu0 %1055
    %v1058 = vmul.f32 %v917, %v1056
    %v1059 = vadd.f32 %v1053, %v1058
    %v1060 = vrcp.pop %v1059
    %v1061 = vmul.f32 %v1059, %v1060
    %v1062 = vsub.f32 1.0, %v1061
    %v1063 = vmul.f32 %v1060, %v1062
    %v1064 = vadd.f32 %v1060, %v1063
    %vm1065 = vweird.f32 %v1059
    %vm1066 = vweird.f32 %v1060
    %vm1067 = vmor %vm1065, %vm1066
    %v1068 = vsel %vm1067, %v1060, %v1064
    %v1069 = vand.u32 2147483647, %v1059
    %vm1070 = vcmp.eq.f32.partialorder %v1069, 8.507059e+37
    %v1071 = vand.u32 %v1059, 2147483648
    %v1072 = vor.u32 1.1754944e-38, %v1071
    %v1073 = vsel %vm1070, %v1072, %v1068
    %v1074 = vmul.f32 %v1047, %v1073
    %v1075 = vadd.f32 %v1037, %v1074
    %1076 = vst [vmem:[#allocation5] sm:$0xff] %v1075
    // Predicated region
    $region14: #{forward.1} parent=1 // pred_check
      _
    $region15: #{forward.1} parent=1 // pred_check_branch
      %1078 = sbr.rel (0) target = $region17
    $region16: #{forward.1} parent=1 // pred_region
      %1080 = vsyncadd [#allocation4], 0
      %s1082 = sshll.u32 [#allocation5], 4
      %s1083 = int_to_ptr.vmem [resolvable:$true] %s1082
      %s1084 = sshll.u32 %s2, 4
      %s1085 = int_to_ptr.hbm [resolvable:$true] %s1084
      %1087 = dma.vmem_to_hbm [thread:$0]  %s1083, 128, %s1085, [#allocation4]
    $region17: #{forward.1} parent=1 // pred_fallthru
      _
    // Predicated region
    $region18: #{forward.1} parent=1 // pred_check
      _
    $region19: #{forward.1} parent=1 // pred_check_branch
      %1089 = sbr.rel (0) target = $region21
    $region20: #{forward.1} parent=1 // pred_region
      _
    $region21: #{forward.1} parent=1 // pred_fallthru
      _
    // Predicated region
    $region22: #{forward.1} parent=1 // pred_check
      _
    $region23: #{forward.1} parent=1 // pred_check_branch
      %1091 = sbr.rel (0) target = $region25
    $region24: #{forward.1} parent=1 // pred_region
      %1093 = dma.done [#allocation4], 128
    $region25: #{forward.1} parent=1 // pred_fallthru
      _
    // Predicated region
    $region26: #{forward.1} parent=1 // pred_check
      _
    $region27: #{forward.1} parent=1 // pred_check_branch
      %1095 = sbr.rel (0) target = $region29
    $region28: #{forward.1} parent=1 // pred_region
      _
    $region29: #{forward.1} parent=1 // pred_fallthru
      _
    %1096 = vsyncpa [#allocation3], 1
    %1097 = vsyncpa [#allocation4], 1

</llo_original>
